<compile_context>
chip_gen: v6e
topology: v6e:2x2x1
jax: 0.10.0
libtpu: 0.0.40
codegen_flags: <defaults>
</compile_context>

<pallas_src>
import functools

import jax
import jax.numpy as jnp
from jax.experimental import pallas as pl
from jax.experimental.pallas import tpu as pltpu

EPS = 1e-5


def _downsample_dson_kernel(use_y_cache, batch_per_step,
                            dom_ref, x_ref, w_ref, gamma_ref, beta_ref,
                            mw_ref, vw_ref, o_ref, *scratch):
    # dom_ref:   (1,) int32 SMEM        domain label (scalar prefetch)
    # x_ref:     (B, Cin, P) bf16/f32   B samples, P = Ho*Wo on lanes
    # w_ref:     (Cout, Cin)            1x1 conv weight
    # gamma_ref: (Cout, 1)              domain-selected affine scale (index_map)
    # beta_ref:  (Cout, 1)              domain-selected affine shift
    # mw_ref:    (num_domains, 2) SMEM  softmaxed mean mixture weights [IN, BN]
    # vw_ref:    (num_domains, 2) SMEM  softmaxed var  mixture weights [IN, BN]
    # o_ref:     (B, Cout, P) f32
    # scratch:   [y-cache (N,Cout,P) f32 if enabled], 4x (N,Cout,1) f32 stats
    if use_y_cache:
        y_scr, mean_scr, var_scr, scale_scr, shift_scr = scratch
    else:
        y_scr = None
        mean_scr, var_scr, scale_scr, shift_scr = scratch

    phase = pl.program_id(0)
    nb = pl.program_id(1)
    num_nb = pl.num_programs(1)

    @pl.when(phase == 0)
    def _conv_and_instance_stats():
        # One (Cout,Cin)@(Cin,P) MXU matmul per sample; stats always from the
        # f32 matmul result, so bf16 HBM I/O never touches the statistics.
        for b in range(batch_per_step):                     # static unroll
            idx = nb * batch_per_step + b
            y = jnp.dot(w_ref[...], x_ref[b],
                        preferred_element_type=jnp.float32)
            m = jnp.mean(y, axis=1, keepdims=True)          # (Cout, 1)
            c = y - m
            v = jnp.mean(c * c, axis=1, keepdims=True)      # centered var
            mean_scr[idx] = m
            var_scr[idx] = v
            if use_y_cache:
                y_scr[idx] = y                              # f32 cache for phase 1

    @pl.when(jnp.logical_and(phase == 0, nb == num_nb - 1))
    def _finalize_stats():
        m_in = mean_scr[...]                                # (N, Cout, 1)
        v_in = var_scr[...]
        m_bn = jnp.mean(m_in, axis=0, keepdims=True)        # (1, Cout, 1)
        dm = m_in - m_bn
        # var_bn = E_n[var_in] + E_n[(mean_in - mean_bn)^2]   (fully centered)
        v_bn = (jnp.mean(v_in, axis=0, keepdims=True)
                + jnp.mean(dm * dm, axis=0, keepdims=True))

        d = dom_ref[0]
        mw_in = mw_ref[d, 0]
        mw_bn = mw_ref[d, 1]
        vw_in = vw_ref[d, 0]
        vw_bn = vw_ref[d, 1]

        mean = mw_in * m_in + mw_bn * m_bn                  # (N, Cout, 1)
        var = vw_in * v_in + vw_bn * v_bn
        inv = jax.lax.rsqrt(var + EPS)
        scale = gamma_ref[...] * inv                        # (N, Cout, 1)
        scale_scr[...] = scale
        shift_scr[...] = beta_ref[...] - mean * scale

    @pl.when(phase == 1)
    def _normalize_and_store():
        for b in range(batch_per_step):                     # static unroll
            idx = nb * batch_per_step + b
            if use_y_cache:
                y = y_scr[idx]
            else:
                y = jnp.dot(w_ref[...], x_ref[b],
                            preferred_element_type=jnp.float32)
            o_ref[b] = (y * scale_scr[idx] + shift_scr[idx]).astype(o_ref.dtype)


def _round_up(v, m):
    return ((v + m - 1) // m) * m


def downsample_forward(x_nchw, conv_w, gamma, beta, mean_w, var_w,
                       domain_label, stride, *, in_dtype=jnp.bfloat16):
    """x_nchw: (N, Cin, H, W) f32; conv_w: (Cout, Cin, 1, 1);
    gamma/beta: (num_domains, Cout); mean_w/var_w: (num_domains, 2)."""
    N, Cin, H, W = x_nchw.shape
    Cout = conv_w.shape[0]
    # TODO(synk): kernel_size > 1 (im2col) not implemented; module default is 1.
    assert conv_w.shape[2] == 1 and conv_w.shape[3] == 1

    # stride for a 1x1 conv == subsampling the input grid.  Fused with the
    # bf16 cast so the materialized intermediate is half-width (see TODO at
    # top of file about folding this into the kernel DMA).
    xs = x_nchw[:, :, ::stride, ::stride]
    Ho, Wo = xs.shape[2], xs.shape[3]
    P = Ho * Wo

    x3 = xs.reshape(N, Cin, P).astype(in_dtype)      # pure reshape + cast
    w2 = conv_w.reshape(Cout, Cin).astype(in_dtype)

    num_domains = gamma.shape[0]
    gamma3 = gamma.reshape(num_domains, Cout, 1).astype(jnp.float32)
    beta3 = beta.reshape(num_domains, Cout, 1).astype(jnp.float32)
    # Softmax of the tiny (num_domains, 2) logits done in the wrapper; the
    # kernel reads the resulting scalars from SMEM.
    mw_soft = jax.nn.softmax(mean_w, axis=-1).astype(jnp.float32)
    vw_soft = jax.nn.softmax(var_w, axis=-1).astype(jnp.float32)
    dom = jnp.asarray([domain_label], dtype=jnp.int32)

    # ---- VMEM budgeting, re-derived per generation (64 MiB v7x, 128 v5e/v6e).
    try:
        vmem_cap = int(pltpu.get_tpu_info().vmem_capacity_bytes)
    except Exception:
        vmem_cap = 64 * 1024 * 1024                 # conservative (v7x per-TC)

    in_bytes = jnp.dtype(in_dtype).itemsize
    p_pad = _round_up(P, 128)
    cin_pad = _round_up(Cin, 8)
    cout_pad = _round_up(Cout, 8)
    per_sample_blk = 2 * (cin_pad * p_pad * in_bytes      # x  (double buffered)
                          + cout_pad * p_pad * 4)         # out (double buffered)

    # Batch as many samples per grid step as fit a fraction of VMEM
    # (bigger DMAs, fewer ~0.35us grid steps, denser store path).
    blk_budget = vmem_cap // 4
    batch_per_step = 1
    for cand in range(1, N + 1):
        if N % cand == 0 and cand * per_sample_blk <= blk_budget:
            batch_per_step = cand
    n_blocks = N // batch_per_step

    stats_bytes = 4 * N * cout_pad * 128 * 4              # 4x (N,Cout,1), padded
    small_bytes = (2 * cout_pad * 128 * in_bytes          # weight block
                   + 4 * cout_pad * 128 * 4)              # gamma/beta blocks
    fixed_bytes = batch_per_step * per_sample_blk + stats_bytes + small_bytes

    # Cache the f32 conv result across phases when it fits: removes the
    # phase-1 x re-read and the recompute matmul entirely.
    y_cache_bytes = N * cout_pad * p_pad * 4
    use_y_cache = (fixed_bytes + y_cache_bytes) <= vmem_cap // 2

    needed = fixed_bytes + (y_cache_bytes if use_y_cache else 0)
    vmem_limit = int(min(max(32 * 1024 * 1024, needed + 16 * 1024 * 1024),
                         int(0.85 * vmem_cap)))

    if use_y_cache:
        # Phase 1 never reads x: park its block index on the last phase-0
        # block so no x DMA at all is issued during the normalize pass.
        x_index = lambda p, n, d: ((1 - p) * n + p * (n_blocks - 1), 0, 0)
    else:
        x_index = lambda p, n, d: (n, 0, 0)

    in_specs = [
        pl.BlockSpec((batch_per_step, Cin, P), x_index),
        pl.BlockSpec((Cout, Cin), lambda p, n, d: (0, 0)),
        pl.BlockSpec((None, Cout, 1), lambda p, n, d: (d[0], 0, 0)),
        pl.BlockSpec((None, Cout, 1), lambda p, n, d: (d[0], 0, 0)),
        pl.BlockSpec(memory_space=pltpu.MemorySpace.SMEM),
        pl.BlockSpec(memory_space=pltpu.MemorySpace.SMEM),
    ]
    # phase 0 never writes the output; keep its block index parked at 0 so no
    # garbage block is ever flushed; phase 1 writes block n exactly once.
    out_specs = pl.BlockSpec((batch_per_step, Cout, P),
                             lambda p, n, d: (p * n, 0, 0))

    scratch_shapes = []
    if use_y_cache:
        scratch_shapes.append(pltpu.VMEM((N, Cout, P), jnp.float32))
    scratch_shapes += [pltpu.VMEM((N, Cout, 1), jnp.float32) for _ in range(4)]

    grid_spec = pltpu.PrefetchScalarGridSpec(
        num_scalar_prefetch=1,            # domain label -> SMEM, used in index_maps
        grid=(2, n_blocks),               # (phase, sample block)
        in_specs=in_specs,
        out_specs=out_specs,
        scratch_shapes=scratch_shapes,
    )

    conv_passes = 1 if use_y_cache else 2
    flops = 2 * conv_passes * N * P * Cin * Cout
    bytes_accessed = (conv_passes * N * Cin * P * in_bytes
                      + Cout * Cin * in_bytes
                      + N * Cout * P * 4)
    cost = pl.CostEstimate(flops=flops, transcendentals=N * Cout,
                           bytes_accessed=bytes_accessed)

    kernel = functools.partial(_downsample_dson_kernel, use_y_cache,
                               batch_per_step)

    out = pl.pallas_call(
        kernel,
        out_shape=jax.ShapeDtypeStruct((N, Cout, P), jnp.float32),
        grid_spec=grid_spec,
        compiler_params=pltpu.CompilerParams(
            # BN stats accumulate sequentially across samples -> both axes serial.
            dimension_semantics=("arbitrary", "arbitrary"),
            vmem_limit_bytes=vmem_limit),
        cost_estimate=cost,
    )(dom, x3, w2, gamma3, beta3, mw_soft, vw_soft)

    return out.reshape(N, Cout, Ho, Wo)


def reference_forward(x_nchw, conv_w, gamma, beta, mean_w, var_w,
                      domain_label, stride, *, in_dtype=jnp.float32):
    """Pure-JAX reference mirroring the PyTorch (training-mode) semantics."""
    xs = x_nchw[:, :, ::stride, ::stride].astype(in_dtype)
    Cout, Cin = conv_w.shape[0], conv_w.shape[1]
    w2 = conv_w.reshape(Cout, Cin).astype(in_dtype)
    y = jnp.einsum("nchw,oc->nohw", xs, w2, preferred_element_type=jnp.float32)
    N, C, Ho, Wo = y.shape
    yf = y.reshape(N, C, -1)
    mean_in = yf.mean(-1, keepdims=True)
    var_in = yf.var(-1, keepdims=True)
    mean_bn = mean_in.mean(0, keepdims=True)
    var_bn = (var_in + mean_in ** 2).mean(0, keepdims=True) - mean_bn ** 2
    mw = jax.nn.softmax(mean_w[domain_label])
    vw = jax.nn.softmax(var_w[domain_label])
    mean = mw[0] * mean_in + mw[1] * mean_bn
    var = vw[0] * var_in + vw[1] * var_bn
    xh = (yf - mean) / jnp.sqrt(var + EPS)
    out = xh * gamma[domain_label][None, :, None] + beta[domain_label][None, :, None]
    return out.reshape(N, C, Ho, Wo)


if __name__ == "__main__":
    # DownSample(inplanes=8, planes=16, stride=2, kernel_size=1, num_domains=3)
    N, Cin, H, W = 2, 8, 16, 16
    Cout, stride, num_domains = 16, 2, 3
    domain_label = 1

    key = jax.random.PRNGKey(0)
    kx, kw, kg, kb, km, kv = jax.random.split(key, 6)

    x = jax.random.normal(kx, (N, Cin, H, W), dtype=jnp.float32)
    conv_w = jax.random.normal(kw, (Cout, Cin, 1, 1), dtype=jnp.float32) / jnp.sqrt(Cin)
    gamma = 1.0 + 0.1 * jax.random.normal(kg, (num_domains, Cout), dtype=jnp.float32)
    beta = 0.1 * jax.random.normal(kb, (num_domains, Cout), dtype=jnp.float32)
    mean_w = 1.0 + 0.1 * jax.random.normal(km, (num_domains, 2), dtype=jnp.float32)
    var_w = 1.0 + 0.1 * jax.random.normal(kv, (num_domains, 2), dtype=jnp.float32)

    out = downsample_forward(x, conv_w, gamma, beta, mean_w, var_w,
                             domain_label, stride, in_dtype=jnp.bfloat16)
    out = jax.block_until_ready(out)

    # Reference uses the same bf16 cast of the conv inputs (f32 accumulation,
    # f32 statistics) so a tight tolerance still catches real bugs.
    ref = reference_forward(x, conv_w, gamma, beta, mean_w, var_w,
                            domain_label, stride, in_dtype=jnp.bfloat16)
    assert out.shape == (N, Cout, H // stride, W // stride)
    assert jnp.allclose(out, ref, rtol=1e-3, atol=1e-3), "mismatch vs reference"

    print("KERNEL_OK")
</pallas_src>

<mosaic_0001>
module attributes {stable_mosaic.version = 11 : i64} {
  func.func @_downsample_dson_kernel(%arg0: i32, %arg1: i32, %arg2: memref<1xi32, #tpu.memory_space<smem>>, %arg3: memref<2x8x64xbf16, #tpu.memory_space<vmem>>, %arg4: memref<16x8xbf16, #tpu.memory_space<vmem>>, %arg5: memref<1x16x1xf32, #tpu.memory_space<vmem>>, %arg6: memref<1x16x1xf32, #tpu.memory_space<vmem>>, %arg7: memref<3x2xf32, #tpu.memory_space<smem>>, %arg8: memref<3x2xf32, #tpu.memory_space<smem>>, %arg9: memref<2x16x64xf32, #tpu.memory_space<vmem>>, %arg10: memref<2x16x64xf32, #tpu.memory_space<vmem>>, %arg11: memref<2x16x1xf32, #tpu.memory_space<vmem>>, %arg12: memref<2x16x1xf32, #tpu.memory_space<vmem>>, %arg13: memref<2x16x1xf32, #tpu.memory_space<vmem>>, %arg14: memref<2x16x1xf32, #tpu.memory_space<vmem>>) attributes {dimension_semantics = [#tpu.dimension_semantics<arbitrary>, #tpu.dimension_semantics<arbitrary>], iteration_bounds = array<i64: 2, 1>, scalar_prefetch = 1 : i64, scratch_operands = 5 : i64, tpu.core_type = #tpu.core_type<tc>, window_params = [{transform_indices = @transform_0, window_bounds = array<i64: 2, 8, 64>}, {pipeline_mode = #tpu.pipeline_mode<synchronous>, transform_indices = @transform_1, window_bounds = array<i64: 16, 8>}, {transform_indices = @transform_2, window_bounds = array<i64: 1, 16, 1>}, {transform_indices = @transform_3, window_bounds = array<i64: 1, 16, 1>}, {transform_indices = @transform_4, window_bounds = array<i64: 3, 2>}, {transform_indices = @transform_5, window_bounds = array<i64: 3, 2>}, {transform_indices = @transform_6, window_bounds = array<i64: 2, 16, 64>}]} {
    %c0_i32 = arith.constant 0 : i32
    %0 = arith.cmpi eq, %arg0, %c0_i32 : i32
    %1 = arith.extui %0 : i1 to i32
    %c0_i32_0 = arith.constant 0 : i32
    %2 = arith.cmpi ne, %1, %c0_i32_0 : i32
    scf.if %2 {
      %c2_i32 = arith.constant 2 : i32
      %11 = arith.muli %arg1, %c2_i32 : i32
      %c0_i32_5 = arith.constant 0 : i32
      %12 = arith.addi %11, %c0_i32_5 : i32
      %c0 = arith.constant 0 : index
      %c0_6 = arith.constant 0 : index
      %13 = vector.load %arg4[%c0, %c0_6] : memref<16x8xbf16, #tpu.memory_space<vmem>>, vector<16x8xbf16>
      %c0_7 = arith.constant 0 : index
      %c0_8 = arith.constant 0 : index
      %c0_9 = arith.constant 0 : index
      %14 = vector.load %arg3[%c0_7, %c0_8, %c0_9] : memref<2x8x64xbf16, #tpu.memory_space<vmem>>, vector<1x8x64xbf16>
      %15 = vector.shape_cast %14 : vector<1x8x64xbf16> to vector<8x64xbf16>
      %cst = arith.constant dense<0.000000e+00> : vector<16x64xf32>
      %16 = tpu.matmul %13, %15, %cst {dimension_numbers = #tpu.dot_dimension_numbers<[1], [0], [0], [1], [0, 0, 1, 1], [], []>} : vector<16x8xbf16>, vector<8x64xbf16>, vector<16x64xf32> -> vector<16x64xf32>
      %cst_10 = arith.constant dense<0.000000e+00> : vector<16xf32>
      %17 = vector.multi_reduction <add>, %16, %cst_10 [1] : vector<16x64xf32> to vector<16xf32>
      %18 = vector.shape_cast %17 : vector<16xf32> to vector<16x1xf32>
      %cst_11 = arith.constant 6.400000e+01 : f32
      %19 = vector.broadcast %cst_11 : f32 to vector<16x1xf32>
      %20 = arith.divf %18, %19 : vector<16x1xf32>
      %21 = vector.broadcast %20 : vector<16x1xf32> to vector<16x64xf32>
      %22 = arith.subf %16, %21 : vector<16x64xf32>
      %23 = arith.mulf %22, %22 : vector<16x64xf32>
      %cst_12 = arith.constant dense<0.000000e+00> : vector<16xf32>
      %24 = vector.multi_reduction <add>, %23, %cst_12 [1] : vector<16x64xf32> to vector<16xf32>
      %25 = vector.shape_cast %24 : vector<16xf32> to vector<16x1xf32>
      %cst_13 = arith.constant 6.400000e+01 : f32
      %26 = vector.broadcast %cst_13 : f32 to vector<16x1xf32>
      %27 = arith.divf %25, %26 : vector<16x1xf32>
      %28 = arith.index_cast %12 : i32 to index
      %c0_14 = arith.constant 0 : index
      %c0_15 = arith.constant 0 : index
      %29 = vector.load %arg11[%28, %c0_14, %c0_15] : memref<2x16x1xf32, #tpu.memory_space<vmem>>, vector<1x16x1xf32>
      %30 = vector.shape_cast %29 : vector<1x16x1xf32> to vector<16x1xf32>
      %31 = vector.shape_cast %20 : vector<16x1xf32> to vector<1x16x1xf32>
      tpu.vector_store %arg11[%28, %c0_14, %c0_15], %31 {strides = array<i32>} : memref<2x16x1xf32, #tpu.memory_space<vmem>>, vector<1x16x1xf32>,
      %32 = arith.index_cast %12 : i32 to index
      %c0_16 = arith.constant 0 : index
      %c0_17 = arith.constant 0 : index
      %33 = vector.load %arg12[%32, %c0_16, %c0_17] : memref<2x16x1xf32, #tpu.memory_space<vmem>>, vector<1x16x1xf32>
      %34 = vector.shape_cast %33 : vector<1x16x1xf32> to vector<16x1xf32>
      %35 = vector.shape_cast %27 : vector<16x1xf32> to vector<1x16x1xf32>
      tpu.vector_store %arg12[%32, %c0_16, %c0_17], %35 {strides = array<i32>} : memref<2x16x1xf32, #tpu.memory_space<vmem>>, vector<1x16x1xf32>,
      %36 = arith.index_cast %12 : i32 to index
      %c0_18 = arith.constant 0 : index
      %c0_19 = arith.constant 0 : index
      %37 = vector.load %arg10[%36, %c0_18, %c0_19] : memref<2x16x64xf32, #tpu.memory_space<vmem>>, vector<1x16x64xf32>
      %38 = vector.shape_cast %37 : vector<1x16x64xf32> to vector<16x64xf32>
      %39 = vector.shape_cast %16 : vector<16x64xf32> to vector<1x16x64xf32>
      tpu.vector_store %arg10[%36, %c0_18, %c0_19], %39 {strides = array<i32>} : memref<2x16x64xf32, #tpu.memory_space<vmem>>, vector<1x16x64xf32>,
      %c2_i32_20 = arith.constant 2 : i32
      %40 = arith.muli %arg1, %c2_i32_20 : i32
      %c1_i32_21 = arith.constant 1 : i32
      %41 = arith.addi %40, %c1_i32_21 : i32
      %c0_22 = arith.constant 0 : index
      %c0_23 = arith.constant 0 : index
      %42 = vector.load %arg4[%c0_22, %c0_23] : memref<16x8xbf16, #tpu.memory_space<vmem>>, vector<16x8xbf16>
      %c1 = arith.constant 1 : index
      %c0_24 = arith.constant 0 : index
      %c0_25 = arith.constant 0 : index
      %43 = vector.load %arg3[%c1, %c0_24, %c0_25] : memref<2x8x64xbf16, #tpu.memory_space<vmem>>, vector<1x8x64xbf16>
      %44 = vector.shape_cast %43 : vector<1x8x64xbf16> to vector<8x64xbf16>
      %cst_26 = arith.constant dense<0.000000e+00> : vector<16x64xf32>
      %45 = tpu.matmul %42, %44, %cst_26 {dimension_numbers = #tpu.dot_dimension_numbers<[1], [0], [0], [1], [0, 0, 1, 1], [], []>} : vector<16x8xbf16>, vector<8x64xbf16>, vector<16x64xf32> -> vector<16x64xf32>
      %cst_27 = arith.constant dense<0.000000e+00> : vector<16xf32>
      %46 = vector.multi_reduction <add>, %45, %cst_27 [1] : vector<16x64xf32> to vector<16xf32>
      %47 = vector.shape_cast %46 : vector<16xf32> to vector<16x1xf32>
      %cst_28 = arith.constant 6.400000e+01 : f32
      %48 = vector.broadcast %cst_28 : f32 to vector<16x1xf32>
      %49 = arith.divf %47, %48 : vector<16x1xf32>
      %50 = vector.broadcast %49 : vector<16x1xf32> to vector<16x64xf32>
      %51 = arith.subf %45, %50 : vector<16x64xf32>
      %52 = arith.mulf %51, %51 : vector<16x64xf32>
      %cst_29 = arith.constant dense<0.000000e+00> : vector<16xf32>
      %53 = vector.multi_reduction <add>, %52, %cst_29 [1] : vector<16x64xf32> to vector<16xf32>
      %54 = vector.shape_cast %53 : vector<16xf32> to vector<16x1xf32>
      %cst_30 = arith.constant 6.400000e+01 : f32
      %55 = vector.broadcast %cst_30 : f32 to vector<16x1xf32>
      %56 = arith.divf %54, %55 : vector<16x1xf32>
      %57 = arith.index_cast %41 : i32 to index
      %c0_31 = arith.constant 0 : index
      %c0_32 = arith.constant 0 : index
      %58 = vector.load %arg11[%57, %c0_31, %c0_32] : memref<2x16x1xf32, #tpu.memory_space<vmem>>, vector<1x16x1xf32>
      %59 = vector.shape_cast %58 : vector<1x16x1xf32> to vector<16x1xf32>
      %60 = vector.shape_cast %49 : vector<16x1xf32> to vector<1x16x1xf32>
      tpu.vector_store %arg11[%57, %c0_31, %c0_32], %60 {strides = array<i32>} : memref<2x16x1xf32, #tpu.memory_space<vmem>>, vector<1x16x1xf32>,
      %61 = arith.index_cast %41 : i32 to index
      %c0_33 = arith.constant 0 : index
      %c0_34 = arith.constant 0 : index
      %62 = vector.load %arg12[%61, %c0_33, %c0_34] : memref<2x16x1xf32, #tpu.memory_space<vmem>>, vector<1x16x1xf32>
      %63 = vector.shape_cast %62 : vector<1x16x1xf32> to vector<16x1xf32>
      %64 = vector.shape_cast %56 : vector<16x1xf32> to vector<1x16x1xf32>
      tpu.vector_store %arg12[%61, %c0_33, %c0_34], %64 {strides = array<i32>} : memref<2x16x1xf32, #tpu.memory_space<vmem>>, vector<1x16x1xf32>,
      %65 = arith.index_cast %41 : i32 to index
      %c0_35 = arith.constant 0 : index
      %c0_36 = arith.constant 0 : index
      %66 = vector.load %arg10[%65, %c0_35, %c0_36] : memref<2x16x64xf32, #tpu.memory_space<vmem>>, vector<1x16x64xf32>
      %67 = vector.shape_cast %66 : vector<1x16x64xf32> to vector<16x64xf32>
      %68 = vector.shape_cast %45 : vector<16x64xf32> to vector<1x16x64xf32>
      tpu.vector_store %arg10[%65, %c0_35, %c0_36], %68 {strides = array<i32>} : memref<2x16x64xf32, #tpu.memory_space<vmem>>, vector<1x16x64xf32>,
    } else {
    }
    %c0_i32_1 = arith.constant 0 : i32
    %3 = arith.cmpi eq, %arg0, %c0_i32_1 : i32
    %c0_i32_2 = arith.constant 0 : i32
    %4 = arith.cmpi eq, %arg1, %c0_i32_2 : i32
    %5 = arith.andi %3, %4 : i1
    %6 = arith.extui %5 : i1 to i32
    %c0_i32_3 = arith.constant 0 : i32
    %7 = arith.cmpi ne, %6, %c0_i32_3 : i32
    scf.if %7 {
      %c0 = arith.constant 0 : index
      %c0_5 = arith.constant 0 : index
      %c0_6 = arith.constant 0 : index
      %11 = vector.load %arg11[%c0, %c0_5, %c0_6] : memref<2x16x1xf32, #tpu.memory_space<vmem>>, vector<2x16x1xf32>
      %c0_7 = arith.constant 0 : index
      %c0_8 = arith.constant 0 : index
      %c0_9 = arith.constant 0 : index
      %12 = vector.load %arg12[%c0_7, %c0_8, %c0_9] : memref<2x16x1xf32, #tpu.memory_space<vmem>>, vector<2x16x1xf32>
      %cst = arith.constant dense<0.000000e+00> : vector<16x1xf32>
      %13 = vector.multi_reduction <add>, %11, %cst [0] : vector<2x16x1xf32> to vector<16x1xf32>
      %14 = vector.shape_cast %13 : vector<16x1xf32> to vector<1x16x1xf32>
      %cst_10 = arith.constant 2.000000e+00 : f32
      %15 = vector.broadcast %cst_10 : f32 to vector<1x16x1xf32>
      %16 = arith.divf %14, %15 : vector<1x16x1xf32>
      %17 = vector.broadcast %16 : vector<1x16x1xf32> to vector<2x16x1xf32>
      %18 = arith.subf %11, %17 : vector<2x16x1xf32>
      %cst_11 = arith.constant dense<0.000000e+00> : vector<16x1xf32>
      %19 = vector.multi_reduction <add>, %12, %cst_11 [0] : vector<2x16x1xf32> to vector<16x1xf32>
      %20 = vector.shape_cast %19 : vector<16x1xf32> to vector<1x16x1xf32>
      %cst_12 = arith.constant 2.000000e+00 : f32
      %21 = vector.broadcast %cst_12 : f32 to vector<1x16x1xf32>
      %22 = arith.divf %20, %21 : vector<1x16x1xf32>
      %23 = arith.mulf %18, %18 : vector<2x16x1xf32>
      %cst_13 = arith.constant dense<0.000000e+00> : vector<16x1xf32>
      %24 = vector.multi_reduction <add>, %23, %cst_13 [0] : vector<2x16x1xf32> to vector<16x1xf32>
      %25 = vector.shape_cast %24 : vector<16x1xf32> to vector<1x16x1xf32>
      %cst_14 = arith.constant 2.000000e+00 : f32
      %26 = vector.broadcast %cst_14 : f32 to vector<1x16x1xf32>
      %27 = arith.divf %25, %26 : vector<1x16x1xf32>
      %28 = arith.addf %22, %27 : vector<1x16x1xf32>
      %c0_15 = arith.constant 0 : index
      %29 = memref.load %arg2[%c0_15] : memref<1xi32, #tpu.memory_space<smem>>
      %30 = arith.index_cast %29 : i32 to index
      %c0_16 = arith.constant 0 : index
      %31 = memref.load %arg7[%30, %c0_16] : memref<3x2xf32, #tpu.memory_space<smem>>
      %32 = arith.index_cast %29 : i32 to index
      %c1 = arith.constant 1 : index
      %33 = memref.load %arg7[%32, %c1] : memref<3x2xf32, #tpu.memory_space<smem>>
      %34 = arith.index_cast %29 : i32 to index
      %c0_17 = arith.constant 0 : index
      %35 = memref.load %arg8[%34, %c0_17] : memref<3x2xf32, #tpu.memory_space<smem>>
      %36 = arith.index_cast %29 : i32 to index
      %c1_18 = arith.constant 1 : index
      %37 = memref.load %arg8[%36, %c1_18] : memref<3x2xf32, #tpu.memory_space<smem>>
      %38 = vector.broadcast %31 : f32 to vector<2x16x1xf32>
      %39 = arith.mulf %38, %11 : vector<2x16x1xf32>
      %40 = vector.broadcast %33 : f32 to vector<1x16x1xf32>
      %41 = arith.mulf %40, %16 : vector<1x16x1xf32>
      %42 = vector.broadcast %41 : vector<1x16x1xf32> to vector<2x16x1xf32>
      %43 = arith.addf %39, %42 : vector<2x16x1xf32>
      %44 = vector.broadcast %35 : f32 to vector<2x16x1xf32>
      %45 = arith.mulf %44, %12 : vector<2x16x1xf32>
      %46 = vector.broadcast %37 : f32 to vector<1x16x1xf32>
      %47 = arith.mulf %46, %28 : vector<1x16x1xf32>
      %48 = vector.broadcast %47 : vector<1x16x1xf32> to vector<2x16x1xf32>
      %49 = arith.addf %45, %48 : vector<2x16x1xf32>
      %cst_19 = arith.constant 9.99999974E-6 : f32
      %50 = vector.broadcast %cst_19 : f32 to vector<2x16x1xf32>
      %51 = arith.addf %49, %50 : vector<2x16x1xf32>
      %52 = math.rsqrt %51 : vector<2x16x1xf32>
      %c0_20 = arith.constant 0 : index
      %c0_21 = arith.constant 0 : index
      %c0_22 = arith.constant 0 : index
      %53 = vector.load %arg5[%c0_20, %c0_21, %c0_22] : memref<1x16x1xf32, #tpu.memory_space<vmem>>, vector<1x16x1xf32>
      %54 = vector.shape_cast %53 : vector<1x16x1xf32> to vector<16x1xf32>
      %55 = vector.shape_cast %54 : vector<16x1xf32> to vector<1x16x1xf32>
      %56 = vector.broadcast %55 : vector<1x16x1xf32> to vector<2x16x1xf32>
      %57 = arith.mulf %56, %52 : vector<2x16x1xf32>
      %c0_23 = arith.constant 0 : index
      %c0_24 = arith.constant 0 : index
      %c0_25 = arith.constant 0 : index
      %58 = vector.load %arg13[%c0_23, %c0_24, %c0_25] : memref<2x16x1xf32, #tpu.memory_space<vmem>>, vector<2x16x1xf32>
      tpu.vector_store %arg13[%c0_23, %c0_24, %c0_25], %57 {strides = array<i32>} : memref<2x16x1xf32, #tpu.memory_space<vmem>>, vector<2x16x1xf32>,
      %c0_26 = arith.constant 0 : index
      %c0_27 = arith.constant 0 : index
      %c0_28 = arith.constant 0 : index
      %59 = vector.load %arg6[%c0_26, %c0_27, %c0_28] : memref<1x16x1xf32, #tpu.memory_space<vmem>>, vector<1x16x1xf32>
      %60 = vector.shape_cast %59 : vector<1x16x1xf32> to vector<16x1xf32>
      %61 = arith.mulf %43, %57 : vector<2x16x1xf32>
      %62 = vector.shape_cast %60 : vector<16x1xf32> to vector<1x16x1xf32>
      %63 = vector.broadcast %62 : vector<1x16x1xf32> to vector<2x16x1xf32>
      %64 = arith.subf %63, %61 : vector<2x16x1xf32>
      %c0_29 = arith.constant 0 : index
      %c0_30 = arith.constant 0 : index
      %c0_31 = arith.constant 0 : index
      %65 = vector.load %arg14[%c0_29, %c0_30, %c0_31] : memref<2x16x1xf32, #tpu.memory_space<vmem>>, vector<2x16x1xf32>
      tpu.vector_store %arg14[%c0_29, %c0_30, %c0_31], %64 {strides = array<i32>} : memref<2x16x1xf32, #tpu.memory_space<vmem>>, vector<2x16x1xf32>,
    } else {
    }
    %c1_i32 = arith.constant 1 : i32
    %8 = arith.cmpi eq, %arg0, %c1_i32 : i32
    %9 = arith.extui %8 : i1 to i32
    %c0_i32_4 = arith.constant 0 : i32
    %10 = arith.cmpi ne, %9, %c0_i32_4 : i32
    scf.if %10 {
      %c2_i32 = arith.constant 2 : i32
      %11 = arith.muli %arg1, %c2_i32 : i32
      %c0_i32_5 = arith.constant 0 : i32
      %12 = arith.addi %11, %c0_i32_5 : i32
      %13 = arith.index_cast %12 : i32 to index
      %c0 = arith.constant 0 : index
      %c0_6 = arith.constant 0 : index
      %14 = vector.load %arg10[%13, %c0, %c0_6] : memref<2x16x64xf32, #tpu.memory_space<vmem>>, vector<1x16x64xf32>
      %15 = vector.shape_cast %14 : vector<1x16x64xf32> to vector<16x64xf32>
      %16 = arith.index_cast %12 : i32 to index
      %c0_7 = arith.constant 0 : index
      %c0_8 = arith.constant 0 : index
      %17 = vector.load %arg13[%16, %c0_7, %c0_8] : memref<2x16x1xf32, #tpu.memory_space<vmem>>, vector<1x16x1xf32>
      %18 = vector.shape_cast %17 : vector<1x16x1xf32> to vector<16x1xf32>
      %19 = vector.broadcast %18 : vector<16x1xf32> to vector<16x64xf32>
      %20 = arith.mulf %15, %19 : vector<16x64xf32>
      %21 = arith.index_cast %12 : i32 to index
      %c0_9 = arith.constant 0 : index
      %c0_10 = arith.constant 0 : index
      %22 = vector.load %arg14[%21, %c0_9, %c0_10] : memref<2x16x1xf32, #tpu.memory_space<vmem>>, vector<1x16x1xf32>
      %23 = vector.shape_cast %22 : vector<1x16x1xf32> to vector<16x1xf32>
      %24 = vector.broadcast %23 : vector<16x1xf32> to vector<16x64xf32>
      %25 = arith.addf %20, %24 : vector<16x64xf32>
      %c0_11 = arith.constant 0 : index
      %c0_12 = arith.constant 0 : index
      %c0_13 = arith.constant 0 : index
      %26 = vector.load %arg9[%c0_11, %c0_12, %c0_13] : memref<2x16x64xf32, #tpu.memory_space<vmem>>, vector<1x16x64xf32>
      %27 = vector.shape_cast %26 : vector<1x16x64xf32> to vector<16x64xf32>
      %28 = vector.shape_cast %25 : vector<16x64xf32> to vector<1x16x64xf32>
      tpu.vector_store %arg9[%c0_11, %c0_12, %c0_13], %28 {strides = array<i32>} : memref<2x16x64xf32, #tpu.memory_space<vmem>>, vector<1x16x64xf32>,
      %c2_i32_14 = arith.constant 2 : i32
      %29 = arith.muli %arg1, %c2_i32_14 : i32
      %c1_i32_15 = arith.constant 1 : i32
      %30 = arith.addi %29, %c1_i32_15 : i32
      %31 = arith.index_cast %30 : i32 to index
      %c0_16 = arith.constant 0 : index
      %c0_17 = arith.constant 0 : index
      %32 = vector.load %arg10[%31, %c0_16, %c0_17] : memref<2x16x64xf32, #tpu.memory_space<vmem>>, vector<1x16x64xf32>
      %33 = vector.shape_cast %32 : vector<1x16x64xf32> to vector<16x64xf32>
      %34 = arith.index_cast %30 : i32 to index
      %c0_18 = arith.constant 0 : index
      %c0_19 = arith.constant 0 : index
      %35 = vector.load %arg13[%34, %c0_18, %c0_19] : memref<2x16x1xf32, #tpu.memory_space<vmem>>, vector<1x16x1xf32>
      %36 = vector.shape_cast %35 : vector<1x16x1xf32> to vector<16x1xf32>
      %37 = vector.broadcast %36 : vector<16x1xf32> to vector<16x64xf32>
      %38 = arith.mulf %33, %37 : vector<16x64xf32>
      %39 = arith.index_cast %30 : i32 to index
      %c0_20 = arith.constant 0 : index
      %c0_21 = arith.constant 0 : index
      %40 = vector.load %arg14[%39, %c0_20, %c0_21] : memref<2x16x1xf32, #tpu.memory_space<vmem>>, vector<1x16x1xf32>
      %41 = vector.shape_cast %40 : vector<1x16x1xf32> to vector<16x1xf32>
      %42 = vector.broadcast %41 : vector<16x1xf32> to vector<16x64xf32>
      %43 = arith.addf %38, %42 : vector<16x64xf32>
      %c1 = arith.constant 1 : index
      %c0_22 = arith.constant 0 : index
      %c0_23 = arith.constant 0 : index
      %44 = vector.load %arg9[%c1, %c0_22, %c0_23] : memref<2x16x64xf32, #tpu.memory_space<vmem>>, vector<1x16x64xf32>
      %45 = vector.shape_cast %44 : vector<1x16x64xf32> to vector<16x64xf32>
      %46 = vector.shape_cast %43 : vector<16x64xf32> to vector<1x16x64xf32>
      tpu.vector_store %arg9[%c1, %c0_22, %c0_23], %46 {strides = array<i32>} : memref<2x16x64xf32, #tpu.memory_space<vmem>>, vector<1x16x64xf32>,
    } else {
    }
    return
  }
  func.func @transform_0(%arg0: i32, %arg1: i32, %arg2: memref<1xi32, #tpu.memory_space<smem>>) -> (i32, i32, i32) {
    %c1_i32 = arith.constant 1 : i32
    %0 = arith.subi %c1_i32, %arg0 : i32
    %1 = arith.muli %0, %arg1 : i32
    %c0_i32 = arith.constant 0 : i32
    %2 = arith.muli %arg0, %c0_i32 : i32
    %3 = arith.addi %1, %2 : i32
    %c0_i32_0 = arith.constant 0 : i32
    %c0_i32_1 = arith.constant 0 : i32
    %c0_i32_2 = arith.constant 0 : i32
    return %3, %c0_i32_0, %c0_i32_1 : i32, i32, i32
  }
  func.func @transform_1(%arg0: i32, %arg1: i32, %arg2: memref<1xi32, #tpu.memory_space<smem>>) -> (i32, i32) {
    %c0_i32 = arith.constant 0 : i32
    %c0_i32_0 = arith.constant 0 : i32
    %c0_i32_1 = arith.constant 0 : i32
    return %c0_i32, %c0_i32_0 : i32, i32
  }
  func.func @transform_2(%arg0: i32, %arg1: i32, %arg2: memref<1xi32, #tpu.memory_space<smem>>) -> (i32, i32, i32) {
    %c0 = arith.constant 0 : index
    %0 = memref.load %arg2[%c0] : memref<1xi32, #tpu.memory_space<smem>>
    %c0_i32 = arith.constant 0 : i32
    %c0_i32_0 = arith.constant 0 : i32
    %c0_i32_1 = arith.constant 0 : i32
    return %0, %c0_i32, %c0_i32_0 : i32, i32, i32
  }
  func.func @transform_3(%arg0: i32, %arg1: i32, %arg2: memref<1xi32, #tpu.memory_space<smem>>) -> (i32, i32, i32) {
    %c0 = arith.constant 0 : index
    %0 = memref.load %arg2[%c0] : memref<1xi32, #tpu.memory_space<smem>>
    %c0_i32 = arith.constant 0 : i32
    %c0_i32_0 = arith.constant 0 : i32
    %c0_i32_1 = arith.constant 0 : i32
    return %0, %c0_i32, %c0_i32_0 : i32, i32, i32
  }
  func.func @transform_4(%arg0: i32, %arg1: i32, %arg2: memref<1xi32, #tpu.memory_space<smem>>) -> (i32, i32) {
    %c0_i32 = arith.constant 0 : i32
    %c0_i32_0 = arith.constant 0 : i32
    %c0_i32_1 = arith.constant 0 : i32
    return %c0_i32, %c0_i32_0 : i32, i32
  }
  func.func @transform_5(%arg0: i32, %arg1: i32, %arg2: memref<1xi32, #tpu.memory_space<smem>>) -> (i32, i32) {
    %c0_i32 = arith.constant 0 : i32
    %c0_i32_0 = arith.constant 0 : i32
    %c0_i32_1 = arith.constant 0 : i32
    return %c0_i32, %c0_i32_0 : i32, i32
  }
  func.func @transform_6(%arg0: i32, %arg1: i32, %arg2: memref<1xi32, #tpu.memory_space<smem>>) -> (i32, i32, i32) {
    %0 = arith.muli %arg0, %arg1 : i32
    %c0_i32 = arith.constant 0 : i32
    %c0_i32_0 = arith.constant 0 : i32
    %c0_i32_1 = arith.constant 0 : i32
    return %0, %c0_i32, %c0_i32_0 : i32, i32, i32
  }
}

</mosaic_0001>

<llo_original>
// kernel: tpu_custom_call.1
$region0: #{tpu_custom_call.1}
  #allocation0 [shape = 'u32[]', space=smem, size = 0x4, offset = 0x4, fixed_abs, tag = 'smem constant byte address 0x4 - core index']
  #allocation1 [shape = 'u32[144,128]{1,0:T(1,128)}', space=vmem, size = 0x12000, scoped, tag = 'internal scratch']
  #allocation2 [shape = 'f32[2,16,64]{2,1,0:T(8,128)}', space=vmem, size = 0x4000, scoped, tag = 'scratch operand']
  #allocation3 [shape = 'f32[2,16,1]{2,1,0:T(8,128)}', space=vmem, size = 0x4000, scoped, tag = 'scratch operand']
  #allocation4 [shape = 'f32[2,16,1]{2,1,0:T(8,128)}', space=vmem, size = 0x4000, scoped, tag = 'scratch operand']
  #allocation5 [shape = 'f32[2,16,1]{2,1,0:T(8,128)}', space=vmem, size = 0x4000, scoped, tag = 'scratch operand']
  #allocation6 [shape = 'f32[2,16,1]{2,1,0:T(8,128)}', space=vmem, size = 0x4000, scoped, tag = 'scratch operand']
  #allocation7 [shape = 's32[1]{0}', space=sflag, size = 0x4, scoped, tag = 'scoped memory for tpu_custom_call.1']
  #allocation8 [shape = 's32[1]{0:T(128)S(6)}', space=smem, size = 0x200, scoped, tag = 'prefetched SMEM operand 0']
  %s0 = inlined_call_operand.<no memory space> [shape: s32[1], index: 0, kind: input, shape index: {}]
  %s1 = inlined_call_operand.vmem [shape: bf16[2,8,64], index: 1, kind: input, shape index: {}]
  %s2 = inlined_call_operand.vmem [shape: bf16[16,8], index: 2, kind: input, shape index: {}]
  %s3 = inlined_call_operand.vmem [shape: f32[3,16,1], index: 3, kind: input, shape index: {}]
  %s4 = inlined_call_operand.vmem [shape: f32[3,16,1], index: 4, kind: input, shape index: {}]
  %s5 = inlined_call_operand.vmem [shape: f32[3,2], index: 5, kind: input, shape index: {}]
  %s6 = inlined_call_operand.vmem [shape: f32[3,2], index: 6, kind: input, shape index: {}]
  %s7 = inlined_call_operand.hbm [shape: f32[2,16,64], index: 7, kind: output, shape index: {}]
  %s8 = sld [smem:[#allocation0]]
  $region77: #{tpu_custom_call.1} parent=0
    _
  %s10 = ssub.s32 1, %s8
  %s11 = scalar_select 0, %s10, %s8
  %12 = sst [smem:[#allocation8]] %s0
  $region1: #{tpu_custom_call.1} parent=0
    #allocation9 [shape = 'u8[2048]{0}', space=smem, size = 0x800, scoped, tag = 'input window, operand 5, single buffered']
    #allocation10 [shape = 's32[2]{0}', space=sflag, size = 0x8, scoped, tag = 'scoped memory for tpu_custom_call.1']
    #allocation11 [shape = 's32[2]{0}', space=sflag, size = 0x8, scoped, tag = 'scoped memory for tpu_custom_call.1']
    #allocation12 [shape = 'u8[2048]{0}', space=smem, size = 0x800, scoped, tag = 'input window, operand 6, single buffered']
    #allocation13 [shape = 's32[1]{0}', space=sflag, size = 0x4, scoped, tag = 'scoped memory for tpu_custom_call.1']
    #allocation14 [shape = 'u8[32768]{0}', space=vmem, size = 0x8000, scoped, tag = 'output window, operand 0']
    %13 = vsyncpa [#allocation11], 0
    %14 = vsyncpa [#allocation13], 0
    %15 = vsyncpa [#allocation10], 0
    %s16 = scalar_lea.sflag [#allocation10], 1
    %17 = vsyncpa %s16, 0
    loop: start=0, step=1, limit=4
    $region2: #{tpu_custom_call.1} parent=1 // loop_pre_header
      _
    $region3: #{tpu_custom_call.1} parent=1 // loop_header
      %s19 = sphi 0, %s23
      %p20 = scmp.ge.s32.totalorder %s19, 4
      %s26 = sphi 0, %s38
      %s27 = sphi 0, %s34
      %s28 = sphi 0, %s26
      %s29 = sphi 0, %s27
      %s30 = sphi 0, %s28
      %s31 = sphi 0, %s29
      %s45 = sphi 0, %s47
      %s48 = sphi 0, %s45
      %s49 = sphi 0, %s48
      %s65 = sphi 0, %s49
      %s69 = sphi 0, %s69
      %s71 = sphi 0, %s69
      %s72 = sphi 0, %s71
      %s86 = sphi 0, %s72
      %s94 = sphi 0, %s96
      %s97 = sphi 0, %s94
      %s98 = sphi 0, %s97
      %s114 = sphi 0, %s98
      %s122 = sphi 0, %s124
      %s125 = sphi 0, %s122
      %s126 = sphi 0, %s125
      %s142 = sphi 0, %s126
      %s146 = sphi 0, %s146
      %s148 = sphi 0, %s146
      %s149 = sphi 0, %s148
      %s163 = sphi 0, %s149
      %s167 = sphi 0, %s167
      %s169 = sphi 0, %s167
      %s170 = sphi 0, %s169
      %s184 = sphi 0, %s170
      %s192 = sphi 0, %s194
      %s195 = sphi 0, %s192
      %s196 = sphi 0, %s195
      %s212 = sphi 0, %s196
    $region4: #{tpu_custom_call.1} parent=1 // loop_header_branch
      %22 = sbr.rel (%p20) target = $region8
    $region5: #{tpu_custom_call.1} parent=1 // loop_body
      %s24 = ssub.s32 %s19, 1
      %s25 = ssub.s32 %s19, 2
      %s32 = sadd.s32 1, %s27
      %p33 = scmp.ge.s32.totalorder %s32, 1
      %s34 = scalar_select %p33, 0, %s32
      %s35 = sadd.s32 1, %s26
      %s36 = scalar_select %p33, %s35, %s26
      %p37 = scmp.ge.s32.totalorder %s36, 2
      %s38 = scalar_select %p37, 0, %s36
      %s39 = ssub.s32 1, %s26
      %s40 = smul.u32 %s39, %s27
      %s41 = ssub.s32 1, %s38
      %s42 = smul.u32 %s41, %s34
      %s43 = ssub.s32 %s40, %s42
      %p44 = scmp.eq.s32.totalorder %s43, 0
      %s46 = sadd.s32 %s45, 1
      %s47 = scalar_select %p44, %s45, %s46
      %p50 = pneg %p44
      %p51 = scmp.eq.s32.totalorder %s19, 1
      %p52 = por %p50, %p51
      %p53 = scmp.ne.s32.totalorder %s45, %s48
      %p54 = scmp.eq.s32.totalorder %s19, 0
      %p55 = por %p53, %p54
      %p56 = scmp.ne.s32.totalorder %s45, %s48
      %p57 = scmp.eq.s32.totalorder %s24, 1
      %p58 = por %p56, %p57
      %p59 = scmp.ne.s32.totalorder %s48, %s49
      %p60 = scmp.eq.s32.totalorder %s24, 0
      %p61 = por %p59, %p60
      %p62 = scmp.ne.s32.totalorder %s48, %s49
      %p63 = scmp.eq.s32.totalorder %s25, 1
      %p64 = por %p62, %p63
      %p66 = scmp.ne.s32.totalorder %s49, %s65
      %p67 = scmp.eq.s32.totalorder %s25, 0
      %p68 = por %p66, %p67
      %s70 = sadd.s32 %s69, 1
      %p73 = scmp.eq.s32.totalorder %s19, 1
      %p74 = scmp.ne.s32.totalorder %s69, %s71
      %p75 = scmp.eq.s32.totalorder %s19, 0
      %p76 = por %p74, %p75
      %p77 = scmp.ne.s32.totalorder %s69, %s71
      %p78 = scmp.eq.s32.totalorder %s24, 1
      %p79 = por %p77, %p78
      %p80 = scmp.ne.s32.totalorder %s71, %s72
      %p81 = scmp.eq.s32.totalorder %s24, 0
      %p82 = por %p80, %p81
      %p83 = scmp.ne.s32.totalorder %s71, %s72
      %p84 = scmp.eq.s32.totalorder %s25, 1
      %p85 = por %p83, %p84
      %p87 = scmp.ne.s32.totalorder %s72, %s86
      %p88 = scmp.eq.s32.totalorder %s25, 0
      %p89 = por %p87, %p88
      %s90 = sld [smem:[#allocation8]]
      %s91 = sld [smem:[#allocation8]]
      %s92 = ssub.s32 %s90, %s91
      %p93 = scmp.eq.s32.totalorder %s92, 0
      %s95 = sadd.s32 %s94, 1
      %s96 = scalar_select %p93, %s94, %s95
      %p99 = pneg %p93
      %p100 = scmp.eq.s32.totalorder %s19, 1
      %p101 = por %p99, %p100
      %p102 = scmp.ne.s32.totalorder %s94, %s97
      %p103 = scmp.eq.s32.totalorder %s19, 0
      %p104 = por %p102, %p103
      %p105 = scmp.ne.s32.totalorder %s94, %s97
      %p106 = scmp.eq.s32.totalorder %s24, 1
      %p107 = por %p105, %p106
      %p108 = scmp.ne.s32.totalorder %s97, %s98
      %p109 = scmp.eq.s32.totalorder %s24, 0
      %p110 = por %p108, %p109
      %p111 = scmp.ne.s32.totalorder %s97, %s98
      %p112 = scmp.eq.s32.totalorder %s25, 1
      %p113 = por %p111, %p112
      %p115 = scmp.ne.s32.totalorder %s98, %s114
      %p116 = scmp.eq.s32.totalorder %s25, 0
      %p117 = por %p115, %p116
      %s118 = sld [smem:[#allocation8]]
      %s119 = sld [smem:[#allocation8]]
      %s120 = ssub.s32 %s118, %s119
      %p121 = scmp.eq.s32.totalorder %s120, 0
      %s123 = sadd.s32 %s122, 1
      %s124 = scalar_select %p121, %s122, %s123
      %p127 = pneg %p121
      %p128 = scmp.eq.s32.totalorder %s19, 1
      %p129 = por %p127, %p128
      %p130 = scmp.ne.s32.totalorder %s122, %s125
      %p131 = scmp.eq.s32.totalorder %s19, 0
      %p132 = por %p130, %p131
      %p133 = scmp.ne.s32.totalorder %s122, %s125
      %p134 = scmp.eq.s32.totalorder %s24, 1
      %p135 = por %p133, %p134
      %p136 = scmp.ne.s32.totalorder %s125, %s126
      %p137 = scmp.eq.s32.totalorder %s24, 0
      %p138 = por %p136, %p137
      %p139 = scmp.ne.s32.totalorder %s125, %s126
      %p140 = scmp.eq.s32.totalorder %s25, 1
      %p141 = por %p139, %p140
      %p143 = scmp.ne.s32.totalorder %s126, %s142
      %p144 = scmp.eq.s32.totalorder %s25, 0
      %p145 = por %p143, %p144
      %s147 = sadd.s32 %s146, 1
      %p150 = scmp.eq.s32.totalorder %s19, 1
      %p151 = scmp.ne.s32.totalorder %s146, %s148
      %p152 = scmp.eq.s32.totalorder %s19, 0
      %p153 = por %p151, %p152
      %p154 = scmp.ne.s32.totalorder %s146, %s148
      %p155 = scmp.eq.s32.totalorder %s24, 1
      %p156 = por %p154, %p155
      %p157 = scmp.ne.s32.totalorder %s148, %s149
      %p158 = scmp.eq.s32.totalorder %s24, 0
      %p159 = por %p157, %p158
      %p160 = scmp.ne.s32.totalorder %s148, %s149
      %p161 = scmp.eq.s32.totalorder %s25, 1
      %p162 = por %p160, %p161
      %p164 = scmp.ne.s32.totalorder %s149, %s163
      %p165 = scmp.eq.s32.totalorder %s25, 0
      %p166 = por %p164, %p165
      %s168 = sadd.s32 %s167, 1
      %p171 = scmp.eq.s32.totalorder %s19, 1
      %p172 = scmp.ne.s32.totalorder %s167, %s169
      %p173 = scmp.eq.s32.totalorder %s19, 0
      %p174 = por %p172, %p173
      %p175 = scmp.ne.s32.totalorder %s167, %s169
      %p176 = scmp.eq.s32.totalorder %s24, 1
      %p177 = por %p175, %p176
      %p178 = scmp.ne.s32.totalorder %s169, %s170
      %p179 = scmp.eq.s32.totalorder %s24, 0
      %p180 = por %p178, %p179
      %p181 = scmp.ne.s32.totalorder %s169, %s170
      %p182 = scmp.eq.s32.totalorder %s25, 1
      %p183 = por %p181, %p182
      %p185 = scmp.ne.s32.totalorder %s170, %s184
      %p186 = scmp.eq.s32.totalorder %s25, 0
      %p187 = por %p185, %p186
      %s188 = smul.u32 %s26, %s27
      %s189 = smul.u32 %s38, %s34
      %s190 = ssub.s32 %s188, %s189
      %p191 = scmp.eq.s32.totalorder %s190, 0
      %s193 = sadd.s32 %s192, 1
      %s194 = scalar_select %p191, %s192, %s193
      %p197 = pneg %p191
      %p198 = scmp.eq.s32.totalorder %s19, 1
      %p199 = por %p197, %p198
      %p200 = scmp.ne.s32.totalorder %s192, %s195
      %p201 = scmp.eq.s32.totalorder %s19, 0
      %p202 = por %p200, %p201
      %p203 = scmp.ne.s32.totalorder %s192, %s195
      %p204 = scmp.eq.s32.totalorder %s24, 1
      %p205 = por %p203, %p204
      %p206 = scmp.ne.s32.totalorder %s195, %s196
      %p207 = scmp.eq.s32.totalorder %s24, 0
      %p208 = por %p206, %p207
      %p209 = scmp.ne.s32.totalorder %s195, %s196
      %p210 = scmp.eq.s32.totalorder %s25, 1
      %p211 = por %p209, %p210
      %p213 = scmp.ne.s32.totalorder %s196, %s212
      %p214 = scmp.eq.s32.totalorder %s25, 0
      %p215 = por %p213, %p214
      %p216 = scmp.le.s32.totalorder 1, %s19
      %p217 = scmp.lt.s32.totalorder %s19, 3
      %p218 = pnand %p216, %p217
      %p219 = pneg %p218
      // Predicated region
      $region9: #{tpu_custom_call.1} parent=5 // pred_check
        _
      $region10: #{tpu_custom_call.1} parent=5 // pred_check_branch
        %221 = sbr.rel (%p218) target = $region12
      $region11: #{tpu_custom_call.1} parent=5 // pred_region
        %s222 = ssub.s32 %s19, 1
        // Predicated region
        $region13: #{tpu_custom_call.1} parent=11 // pred_check
          %p223 = pneg %p82
        $region14: #{tpu_custom_call.1} parent=11 // pred_check_branch
          %225 = sbr.rel (%p223) target = $region16
        $region15: #{tpu_custom_call.1} parent=11 // pred_region
          _
        $region16: #{tpu_custom_call.1} parent=11 // pred_fallthru
          _
        // Predicated region
        $region17: #{tpu_custom_call.1} parent=11 // pred_check
          %p226 = pneg %p110
        $region18: #{tpu_custom_call.1} parent=11 // pred_check_branch
          %228 = sbr.rel (%p226) target = $region20
        $region19: #{tpu_custom_call.1} parent=11 // pred_region
          %s229 = sld [smem:[#allocation8]]
          %p230 = scmp.lt.s32.totalorder %s229, 2
          %s231 = scalar_select %p230, %s229, 2
          %s232 = smul.addr %s231, 2
          %s233 = smul.addr %s232, 8
          %s234 = scalar_lea.vmem %s3, %s233
          %s235 = sld [smem:[#allocation8]]
        $region20: #{tpu_custom_call.1} parent=11 // pred_fallthru
          _
        // Predicated region
        $region21: #{tpu_custom_call.1} parent=11 // pred_check
          %p236 = pneg %p138
        $region22: #{tpu_custom_call.1} parent=11 // pred_check_branch
          %238 = sbr.rel (%p236) target = $region24
        $region23: #{tpu_custom_call.1} parent=11 // pred_region
          %s239 = sld [smem:[#allocation8]]
          %p240 = scmp.lt.s32.totalorder %s239, 2
          %s241 = scalar_select %p240, %s239, 2
          %s242 = smul.addr %s241, 2
          %s243 = smul.addr %s242, 8
          %s244 = scalar_lea.vmem %s4, %s243
          %s245 = sld [smem:[#allocation8]]
        $region24: #{tpu_custom_call.1} parent=11 // pred_fallthru
          _
        // Predicated region
        $region25: #{tpu_custom_call.1} parent=11 // pred_check
          %p246 = pneg %p159
        $region26: #{tpu_custom_call.1} parent=11 // pred_check_branch
          %248 = sbr.rel (%p246) target = $region28
        $region27: #{tpu_custom_call.1} parent=11 // pred_region
          %s250 = ssub.s32 64, 64
          %251 = vsyncadd [#allocation11], %s250
          %s253 = sshll.u32 %s5, 4
          %s254 = int_to_ptr.vmem [resolvable:$true] %s253
          %256 = dma.vmem_to_smem %s254, 64, [#allocation9], [#allocation11]
        $region28: #{tpu_custom_call.1} parent=11 // pred_fallthru
          _
        // Predicated region
        $region29: #{tpu_custom_call.1} parent=11 // pred_check
          %p257 = pneg %p180
        $region30: #{tpu_custom_call.1} parent=11 // pred_check_branch
          %259 = sbr.rel (%p257) target = $region32
        $region31: #{tpu_custom_call.1} parent=11 // pred_region
          %s261 = ssub.s32 64, 64
          %262 = vsyncadd [#allocation13], %s261
          %s264 = sshll.u32 %s6, 4
          %s265 = int_to_ptr.vmem [resolvable:$true] %s264
          %267 = dma.vmem_to_smem %s265, 64, [#allocation12], [#allocation13]
        $region32: #{tpu_custom_call.1} parent=11 // pred_fallthru
          _
      $region12: #{tpu_custom_call.1} parent=5 // pred_fallthru
        _
      %p268 = scmp.lt.s32.totalorder %s19, 2
      // Predicated region
      $region33: #{tpu_custom_call.1} parent=5 // pred_check
        %p269 = pneg %p268
      $region34: #{tpu_custom_call.1} parent=5 // pred_check_branch
        %271 = sbr.rel (%p269) target = $region36
      $region35: #{tpu_custom_call.1} parent=5 // pred_region
        // Predicated region
        $region37: #{tpu_custom_call.1} parent=35 // pred_check
          %p272 = pneg %p55
        $region38: #{tpu_custom_call.1} parent=35 // pred_check_branch
          %274 = sbr.rel (%p272) target = $region40
        $region39: #{tpu_custom_call.1} parent=35 // pred_region
          %s275 = ssub.s32 1, %s26
          %s276 = smul.u32 %s275, %s27
          %s277 = smul.u32 2, %s276
          %p278 = scmp.lt.s32.totalorder %s277, 1
          %s279 = scalar_select %p278, %s277, 1
          %s280 = smul.addr %s279, 4
          %s281 = scalar_lea.vmem %s1, %s280
          %s282 = ssub.s32 1, %s26
          %s283 = smul.u32 %s282, %s27
          %s284 = smul.u32 2, %s283
        $region40: #{tpu_custom_call.1} parent=35 // pred_fallthru
          _
      $region36: #{tpu_custom_call.1} parent=5 // pred_fallthru
        _
      %p285 = scmp.le.s32.totalorder 1, %s19
      %p286 = scmp.lt.s32.totalorder %s19, 3
      %p287 = pnand %p285, %p286
      %p288 = pneg %p287
      // Predicated region
      $region41: #{tpu_custom_call.1} parent=5 // pred_check
        _
      $region42: #{tpu_custom_call.1} parent=5 // pred_check_branch
        %290 = sbr.rel (%p287) target = $region44
      $region43: #{tpu_custom_call.1} parent=5 // pred_region
        %s291 = ssub.s32 %s19, 1
        // Predicated region
        $region45: #{tpu_custom_call.1} parent=43 // pred_check
          %p292 = pneg %p159
        $region46: #{tpu_custom_call.1} parent=43 // pred_check_branch
          %294 = sbr.rel (%p292) target = $region48
        $region47: #{tpu_custom_call.1} parent=43 // pred_region
          %295 = dma.done [#allocation11], 64
        $region48: #{tpu_custom_call.1} parent=43 // pred_fallthru
          _
        // Predicated region
        $region49: #{tpu_custom_call.1} parent=43 // pred_check
          %p296 = pneg %p180
        $region50: #{tpu_custom_call.1} parent=43 // pred_check_branch
          %298 = sbr.rel (%p296) target = $region52
        $region51: #{tpu_custom_call.1} parent=43 // pred_region
          %299 = dma.done [#allocation13], 64
        $region52: #{tpu_custom_call.1} parent=43 // pred_fallthru
          _
        %300 = sfence
        %s301 = ssub.s32 1, %s28
        %s302 = smul.u32 %s301, %s29
        %s303 = smul.u32 2, %s302
        %p304 = scmp.lt.s32.totalorder %s303, 1
        %s305 = scalar_select %p304, %s303, 1
        %s306 = smul.addr %s305, 4
        %s307 = scalar_lea.vmem %s1, %s306
        %p308 = pneg %p61
        %p309 = pneg %p58
        %p310 = pneg %p82
        %p311 = pneg %p79
        %s312 = sld [smem:[#allocation8]]
        %p313 = scmp.lt.s32.totalorder %s312, 2
        %s314 = scalar_select %p313, %s312, 2
        %s315 = smul.addr %s314, 2
        %s316 = smul.addr %s315, 8
        %s317 = scalar_lea.vmem %s3, %s316
        %p318 = pneg %p110
        %p319 = pneg %p107
        %s320 = sld [smem:[#allocation8]]
        %p321 = scmp.lt.s32.totalorder %s320, 2
        %s322 = scalar_select %p321, %s320, 2
        %s323 = smul.addr %s322, 2
        %s324 = smul.addr %s323, 8
        %s325 = scalar_lea.vmem %s4, %s324
        %p326 = pneg %p138
        %p327 = pneg %p135
        %p328 = pneg %p159
        %p329 = pneg %p156
        %p330 = pneg %p180
        %p331 = pneg %p177
        %p332 = pneg %p208
        %p333 = pneg %p205
        %s334 = sand.u32 %s195, 1
        %s335 = scalar_lea.sflag [#allocation10], %s334
        %s336 = sand.u32 %s195, 1
        %s337 = smul.addr %s336, 32
        %s338 = scalar_lea.vmem [#allocation14], %s337
        %s339 = ssub.s32 1, %s28
        %s340 = smul.u32 %s339, %s29
        %s341 = smul.u32 2, %s340
        %p342 = scmp.lt.s32.totalorder %s341, 1
        %s343 = scalar_select %p342, %s341, 1
        %s344 = smul.addr %s343, 4
        %s345 = scalar_lea.vmem %s1, %s344
        %s346 = ssub.s32 1, %s28
        %s347 = smul.u32 %s346, %s29
        %s348 = smul.u32 2, %s347
        %s349 = sld [smem:[#allocation8]]
        %p350 = scmp.lt.s32.totalorder %s349, 2
        %s351 = scalar_select %p350, %s349, 2
        %s352 = smul.addr %s351, 2
        %s353 = smul.addr %s352, 8
        %s354 = scalar_lea.vmem %s3, %s353
        %s355 = sld [smem:[#allocation8]]
        %s356 = sld [smem:[#allocation8]]
        %p357 = scmp.lt.s32.totalorder %s356, 2
        %s358 = scalar_select %p357, %s356, 2
        %s359 = smul.addr %s358, 2
        %s360 = smul.addr %s359, 8
        %s361 = scalar_lea.vmem %s4, %s360
        %s362 = sld [smem:[#allocation8]]
        %s363 = smul.u32 %s28, %s29
        %s364 = smul.u32 2, %s363
        %p366 = scmp.eq.s32.totalorder %s28, 0
        // Predicated region
        $region53: #{tpu_custom_call.1} parent=43 // pred_check
          %p367 = pneg %p366
        $region54: #{tpu_custom_call.1} parent=43 // pred_check_branch
          %369 = sbr.rel (%p367) target = $region56
        $region55: #{tpu_custom_call.1} parent=43 // pred_region
          %s370 = smul.u32 %s29, 2
          %v371 = vld [vmem:[%s2] sm:$0xf]
          %v372 = vld [vmem:[%s2 + $0x4] sm:$0xf]
          %v373 = vld [vmem:[%s345] sm:$0xf]
          %v376 = vunpack.c.l.b16 %v371
          %v377 = vunpack.c.l.b16 %v372
          %v378 = vpack.c.b16 %v377, %v376
          %vm379 = vcmask 64512
          %v381 = vsel %vm379, %v378, 0
          %vm383 = vcmask 1043456
          %v385 = vsel %vm383, %v373, 0
          %387 = vmatprep.subr.bf16.mxu0 0
          %388 = vmatpush1.bf16.msra.mxu0 0
          %389 = vmatprep.subr.bf16.mxu0 0
          %390 = vmatpush1.bf16.msra.mxu0 0
          %391 = vmatprep.subr.bf16.mxu0 0
          %392 = vmatpush1.bf16.msra.mxu0 0
          %393 = vmatprep.subr.bf16.mxu0 0
          %394 = vmatpush1.bf16.msra.mxu0 0
          %395 = vmatprep.subr.bf16.mxu0 0
          %396 = vmatpush1.bf16.msra.mxu0 0
          %397 = vmatprep.subr.bf16.mxu0 0
          %398 = vmatpush1.bf16.msra.mxu0 0
          %399 = vmatprep.subr.bf16.mxu0 0
          %400 = vmatpush1.bf16.msra.mxu0 0
          %401 = vmatprep.subr.bf16.mxu0 0
          %402 = vmatpush1.bf16.msra.mxu0 %v385
          %403 = vmatprep.subr.bf16.mxu0 0
          %404 = vmatpush2.bf16.msra.mxu0 0
          %405 = vmatprep.subr.bf16.mxu0 0
          %406 = vmatpush2.bf16.msra.mxu0 0
          %407 = vmatprep.subr.bf16.mxu0 0
          %408 = vmatpush2.bf16.msra.mxu0 0
          %409 = vmatprep.subr.bf16.mxu0 0
          %410 = vmatpush2.bf16.msra.mxu0 0
          %411 = vmatprep.subr.bf16.mxu0 0
          %412 = vmatpush2.bf16.msra.mxu0 0
          %413 = vmatprep.subr.bf16.mxu0 0
          %414 = vmatpush2.bf16.msra.mxu0 0
          %415 = vmatprep.subr.bf16.mxu0 0
          %416 = vmatpush2.bf16.msra.mxu0 0
          %417 = vmatprep.subr.bf16.mxu0 0
          %418 = vmatpush2.bf16.msra.mxu0 0
          %419 = vmatprep.mubr.bf16.mxu0 0
          %420 = vmatmul.mubr.bf16.gmra.mxu0 %v381
          %v421 = vpop.f32.mrf.mxu0
          %v422 = vadd.f32 0.0, %v421
          %v423 = vpop.f32.mrf.mxu0
          %v424 = vpop.f32.mrf.mxu0
          %v425 = vadd.f32 0.0, %v424
          %v426 = vpop.f32.mrf.mxu0
          %427 = vdwg.mxu0
          %vm428 = vcmask 523264
          %v429 = vsel %vm428, %v422, 0.0
          %430 = vadd.xlane.f32.xlu0 %v429
          %v431 = vpop.xlane.xlu0 %430
          %v432 = vsel %vm428, %v425, 0.0
          %433 = vadd.xlane.f32.xlu0 %v432
          %v434 = vpop.xlane.xlu0 %433
          %v435 = vrcp.pop 64.0
          %v436 = vmul.f32 %v431, %v435
          %v437 = vmul.f32 %v434, %v435
          %v438 = vsub.f32 %v422, %v436
          %v439 = vsub.f32 %v425, %v437
          %v440 = vmul.f32 %v438, %v438
          %v441 = vmul.f32 %v439, %v439
          %v442 = vsel %vm428, %v440, 0.0
          %443 = vadd.xlane.f32.xlu0 %v442
          %v444 = vpop.xlane.xlu0 %443
          %v445 = vsel %vm428, %v441, 0.0
          %446 = vadd.xlane.f32.xlu0 %v445
          %v447 = vpop.xlane.xlu0 %446
          %v448 = vmul.f32 %v444, %v435
          %v449 = vmul.f32 %v447, %v435
          %s450 = smul.u32 %s370, 16
          %s451 = scalar_lea.vmem [#allocation3], %s450
          %vm452 = vcmask 7168
          %453 = vst.msk [vmem:[%s451] sm:$0xff] %vm452, %v436
          %454 = vst.msk [vmem:[%s451 + $0x8] sm:$0xff] %vm452, %v437
          %s455 = scalar_lea.vmem [#allocation4], %s450
          %456 = vst.msk [vmem:[%s455] sm:$0xff] %vm452, %v448
          %457 = vst.msk [vmem:[%s455 + $0x8] sm:$0xff] %vm452, %v449
          %s458 = scalar_lea.vmem [#allocation2], %s450
          %459 = vst.msk [vmem:[%s458] sm:$0xff] %vm428, %v422
          %460 = vst.msk [vmem:[%s458 + $0x8] sm:$0xff] %vm428, %v425
          %s461 = sadd.s32 %s370, 1
          %v462 = vld [vmem:[%s2] sm:$0xf]
          %v463 = vld [vmem:[%s2 + $0x4] sm:$0xf]
          %s464 = scalar_lea.vmem %s345, 4
          %v465 = vld [vmem:[%s464] sm:$0xf]
          %v468 = vunpack.c.l.b16 %v462
          %v469 = vunpack.c.l.b16 %v463
          %v470 = vpack.c.b16 %v469, %v468
          %v472 = vsel %vm379, %v470, 0
          %v475 = vsel %vm383, %v465, 0
          %477 = vmatprep.subr.bf16.mxu0 0
          %478 = vmatpush1.bf16.msra.mxu0 0
          %479 = vmatprep.subr.bf16.mxu0 0
          %480 = vmatpush1.bf16.msra.mxu0 0
          %481 = vmatprep.subr.bf16.mxu0 0
          %482 = vmatpush1.bf16.msra.mxu0 0
          %483 = vmatprep.subr.bf16.mxu0 0
          %484 = vmatpush1.bf16.msra.mxu0 0
          %485 = vmatprep.subr.bf16.mxu0 0
          %486 = vmatpush1.bf16.msra.mxu0 0
          %487 = vmatprep.subr.bf16.mxu0 0
          %488 = vmatpush1.bf16.msra.mxu0 0
          %489 = vmatprep.subr.bf16.mxu0 0
          %490 = vmatpush1.bf16.msra.mxu0 0
          %491 = vmatprep.subr.bf16.mxu0 0
          %492 = vmatpush1.bf16.msra.mxu0 %v475
          %493 = vmatprep.subr.bf16.mxu0 0
          %494 = vmatpush2.bf16.msra.mxu0 0
          %495 = vmatprep.subr.bf16.mxu0 0
          %496 = vmatpush2.bf16.msra.mxu0 0
          %497 = vmatprep.subr.bf16.mxu0 0
          %498 = vmatpush2.bf16.msra.mxu0 0
          %499 = vmatprep.subr.bf16.mxu0 0
          %500 = vmatpush2.bf16.msra.mxu0 0
          %501 = vmatprep.subr.bf16.mxu0 0
          %502 = vmatpush2.bf16.msra.mxu0 0
          %503 = vmatprep.subr.bf16.mxu0 0
          %504 = vmatpush2.bf16.msra.mxu0 0
          %505 = vmatprep.subr.bf16.mxu0 0
          %506 = vmatpush2.bf16.msra.mxu0 0
          %507 = vmatprep.subr.bf16.mxu0 0
          %508 = vmatpush2.bf16.msra.mxu0 0
          %509 = vmatprep.mubr.bf16.mxu0 0
          %510 = vmatmul.mubr.bf16.gmra.mxu0 %v472
          %v511 = vpop.f32.mrf.mxu0
          %v512 = vadd.f32 0.0, %v511
          %v513 = vpop.f32.mrf.mxu0
          %v514 = vpop.f32.mrf.mxu0
          %v515 = vadd.f32 0.0, %v514
          %v516 = vpop.f32.mrf.mxu0
          %517 = vdwg.mxu0
          %v518 = vsel %vm428, %v512, 0.0
          %519 = vadd.xlane.f32.xlu0 %v518
          %v520 = vpop.xlane.xlu0 %519
          %v521 = vsel %vm428, %v515, 0.0
          %522 = vadd.xlane.f32.xlu0 %v521
          %v523 = vpop.xlane.xlu0 %522
          %v524 = vmul.f32 %v520, %v435
          %v525 = vmul.f32 %v523, %v435
          %v526 = vsub.f32 %v512, %v524
          %v527 = vsub.f32 %v515, %v525
          %v528 = vmul.f32 %v526, %v526
          %v529 = vmul.f32 %v527, %v527
          %v530 = vsel %vm428, %v528, 0.0
          %531 = vadd.xlane.f32.xlu0 %v530
          %v532 = vpop.xlane.xlu0 %531
          %v533 = vsel %vm428, %v529, 0.0
          %534 = vadd.xlane.f32.xlu0 %v533
          %v535 = vpop.xlane.xlu0 %534
          %v536 = vmul.f32 %v532, %v435
          %v537 = vmul.f32 %v535, %v435
          %s538 = smul.u32 %s461, 16
          %s539 = scalar_lea.vmem [#allocation3], %s538
          %540 = vst.msk [vmem:[%s539] sm:$0xff] %vm452, %v524
          %541 = vst.msk [vmem:[%s539 + $0x8] sm:$0xff] %vm452, %v525
          %s542 = scalar_lea.vmem [#allocation4], %s538
          %543 = vst.msk [vmem:[%s542] sm:$0xff] %vm452, %v536
          %544 = vst.msk [vmem:[%s542 + $0x8] sm:$0xff] %vm452, %v537
          %s545 = scalar_lea.vmem [#allocation2], %s538
          %546 = vst.msk [vmem:[%s545] sm:$0xff] %vm428, %v512
          %547 = vst.msk [vmem:[%s545 + $0x8] sm:$0xff] %vm428, %v515
        $region56: #{tpu_custom_call.1} parent=43 // pred_fallthru
          _
        %p548 = scmp.eq.s32.totalorder %s29, 0
        %p549 = pnand %p366, %p548
        %p550 = pneg %p549
        // Predicated region
        $region57: #{tpu_custom_call.1} parent=43 // pred_check
          _
        $region58: #{tpu_custom_call.1} parent=43 // pred_check_branch
          %552 = sbr.rel (%p549) target = $region60
        $region59: #{tpu_custom_call.1} parent=43 // pred_region
          %v553 = vld [vmem:[#allocation3] sm:$0xff]
          %v554 = vld [vmem:[#allocation3 + $0x8] sm:$0xff]
          %v555 = vld [vmem:[#allocation3 + $0x10] sm:$0xff]
          %v556 = vld [vmem:[#allocation3 + $0x18] sm:$0xff]
          %v557 = vld [vmem:[#allocation4] sm:$0xff]
          %v558 = vld [vmem:[#allocation4 + $0x8] sm:$0xff]
          %v559 = vld [vmem:[#allocation4 + $0x10] sm:$0xff]
          %v560 = vld [vmem:[#allocation4 + $0x18] sm:$0xff]
          %vm561 = vcmask 7168
          %v562 = vsel %vm561, %v553, 0.0
          %v563 = vsel %vm561, %v555, 0.0
          %v564 = vadd.f32 %v562, %v563
          %v565 = vsel %vm561, %v554, 0.0
          %v566 = vsel %vm561, %v556, 0.0
          %v567 = vadd.f32 %v565, %v566
          %v568 = vrcp.pop 2.0
          %v569 = vmul.f32 %v564, %v568
          %v570 = vmul.f32 %v567, %v568
          %v571 = vsub.f32 %v553, %v569
          %v572 = vsub.f32 %v554, %v570
          %v573 = vsub.f32 %v555, %v569
          %v574 = vsub.f32 %v556, %v570
          %v575 = vsel %vm561, %v557, 0.0
          %v576 = vsel %vm561, %v559, 0.0
          %v577 = vadd.f32 %v575, %v576
          %v578 = vsel %vm561, %v558, 0.0
          %v579 = vsel %vm561, %v560, 0.0
          %v580 = vadd.f32 %v578, %v579
          %v581 = vmul.f32 %v577, %v568
          %v582 = vmul.f32 %v580, %v568
          %v583 = vmul.f32 %v571, %v571
          %v584 = vmul.f32 %v572, %v572
          %v585 = vmul.f32 %v573, %v573
          %v586 = vmul.f32 %v574, %v574
          %v587 = vsel %vm561, %v583, 0.0
          %v588 = vsel %vm561, %v585, 0.0
          %v589 = vadd.f32 %v587, %v588
          %v590 = vsel %vm561, %v584, 0.0
          %v591 = vsel %vm561, %v586, 0.0
          %v592 = vadd.f32 %v590, %v591
          %v593 = vmul.f32 %v589, %v568
          %v594 = vmul.f32 %v592, %v568
          %v595 = vadd.f32 %v581, %v593
          %v596 = vadd.f32 %v582, %v594
          %s597 = sld [smem:[#allocation8]]
          %s598 = smul.u32 %s597, 128
          %s599 = sld [smem:[#allocation9 + %s598]]
          %s600 = sadd.s32 %s598, 1
          %s601 = sld [smem:[#allocation9 + %s600]]
          %s602 = sld [smem:[#allocation12 + %s598]]
          %s603 = sld [smem:[#allocation12 + %s600]]
          %v604 = vstv %s599
          %v605 = vmul.f32 %v604, %v553
          %v606 = vmul.f32 %v604, %v554
          %v607 = vmul.f32 %v604, %v555
          %v608 = vmul.f32 %v604, %v556
          %v609 = vstv %s601
          %v610 = vmul.f32 %v609, %v569
          %v611 = vmul.f32 %v609, %v570
          %v612 = vadd.f32 %v605, %v610
          %v613 = vadd.f32 %v606, %v611
          %v614 = vadd.f32 %v607, %v610
          %v615 = vadd.f32 %v608, %v611
          %v616 = vstv %s602
          %v617 = vmul.f32 %v616, %v557
          %v618 = vmul.f32 %v616, %v558
          %v619 = vmul.f32 %v616, %v559
          %v620 = vmul.f32 %v616, %v560
          %v621 = vstv %s603
          %v622 = vmul.f32 %v621, %v595
          %v623 = vmul.f32 %v621, %v596
          %v624 = vadd.f32 %v617, %v622
          %v625 = vadd.f32 %v618, %v623
          %v626 = vadd.f32 %v619, %v622
          %v627 = vadd.f32 %v620, %v623
          %v628 = vadd.f32 %v624, 1e-05
          %v629 = vadd.f32 %v625, 1e-05
          %v630 = vadd.f32 %v626, 1e-05
          %v631 = vadd.f32 %v627, 1e-05
          %v632 = vrsqrt.pop %v628
          %v633 = vrsqrt.pop %v629
          %v634 = vrsqrt.pop %v630
          %v635 = vrsqrt.pop %v631
          %v636 = vld [vmem:[%s354] sm:$0xff]
          %v637 = vld [vmem:[%s354 + $0x8] sm:$0xff]
          %v638 = vmul.f32 %v636, %v632
          %v639 = vmul.f32 %v637, %v633
          %v640 = vmul.f32 %v636, %v634
          %v641 = vmul.f32 %v637, %v635
          %642 = vst.msk [vmem:[#allocation5] sm:$0xff] %vm561, %v638
          %643 = vst.msk [vmem:[#allocation5 + $0x8] sm:$0xff] %vm561, %v639
          %644 = vst.msk [vmem:[#allocation5 + $0x10] sm:$0xff] %vm561, %v640
          %645 = vst.msk [vmem:[#allocation5 + $0x18] sm:$0xff] %vm561, %v641
          %v646 = vld [vmem:[%s361] sm:$0xff]
          %v647 = vld [vmem:[%s361 + $0x8] sm:$0xff]
          %v648 = vmul.f32 %v612, %v638
          %v649 = vmul.f32 %v613, %v639
          %v650 = vmul.f32 %v614, %v640
          %v651 = vmul.f32 %v615, %v641
          %v652 = vsub.f32 %v646, %v648
          %v653 = vsub.f32 %v647, %v649
          %v654 = vsub.f32 %v646, %v650
          %v655 = vsub.f32 %v647, %v651
          %656 = vst.msk [vmem:[#allocation6] sm:$0xff] %vm561, %v652
          %657 = vst.msk [vmem:[#allocation6 + $0x8] sm:$0xff] %vm561, %v653
          %658 = vst.msk [vmem:[#allocation6 + $0x10] sm:$0xff] %vm561, %v654
          %659 = vst.msk [vmem:[#allocation6 + $0x18] sm:$0xff] %vm561, %v655
        $region60: #{tpu_custom_call.1} parent=43 // pred_fallthru
          _
        %p660 = scmp.eq.s32.totalorder %s28, 1
        // Predicated region
        $region61: #{tpu_custom_call.1} parent=43 // pred_check
          %p661 = pneg %p660
        $region62: #{tpu_custom_call.1} parent=43 // pred_check_branch
          %663 = sbr.rel (%p661) target = $region64
        $region63: #{tpu_custom_call.1} parent=43 // pred_region
          %s664 = smul.u32 %s29, 2
          %s665 = smul.u32 %s664, 16
          %s666 = scalar_lea.vmem [#allocation2], %s665
          %v667 = vld [vmem:[%s666] sm:$0xff]
          %v668 = vld [vmem:[%s666 + $0x8] sm:$0xff]
          %s669 = scalar_lea.vmem [#allocation5], %s665
          %v670 = vld [vmem:[%s669] sm:$0xff]
          %v671 = vld [vmem:[%s669 + $0x8] sm:$0xff]
          %673 = vset.pattern.permute.xlu0 0
          %674 = vperm.xlu0 %673, %v670
          %v675 = vpop.permute.xlu0 %674
          %678 = vset.pattern.permute.xlu0 0
          %679 = vperm.xlu0 %678, %v671
          %v680 = vpop.permute.xlu0 %679
          %v682 = vmul.f32 %v667, %v675
          %v683 = vmul.f32 %v668, %v680
          %s684 = scalar_lea.vmem [#allocation6], %s665
          %v685 = vld [vmem:[%s684] sm:$0xff]
          %v686 = vld [vmem:[%s684 + $0x8] sm:$0xff]
          %688 = vset.pattern.permute.xlu0 0
          %689 = vperm.xlu0 %688, %v685
          %v690 = vpop.permute.xlu0 %689
          %693 = vset.pattern.permute.xlu0 0
          %694 = vperm.xlu0 %693, %v686
          %v695 = vpop.permute.xlu0 %694
          %v697 = vadd.f32 %v682, %v690
          %v698 = vadd.f32 %v683, %v695
          %vm699 = vcmask 523264
          %700 = vst.msk [vmem:[%s338] sm:$0xff] %vm699, %v697
          %701 = vst.msk [vmem:[%s338 + $0x8] sm:$0xff] %vm699, %v698
          %s702 = sadd.s32 %s664, 1
          %s703 = smul.u32 %s702, 16
          %s704 = scalar_lea.vmem [#allocation2], %s703
          %v705 = vld [vmem:[%s704] sm:$0xff]
          %v706 = vld [vmem:[%s704 + $0x8] sm:$0xff]
          %s707 = scalar_lea.vmem [#allocation5], %s703
          %v708 = vld [vmem:[%s707] sm:$0xff]
          %v709 = vld [vmem:[%s707 + $0x8] sm:$0xff]
          %711 = vset.pattern.permute.xlu0 0
          %712 = vperm.xlu0 %711, %v708
          %v713 = vpop.permute.xlu0 %712
          %716 = vset.pattern.permute.xlu0 0
          %717 = vperm.xlu0 %716, %v709
          %v718 = vpop.permute.xlu0 %717
          %v720 = vmul.f32 %v705, %v713
          %v721 = vmul.f32 %v706, %v718
          %s722 = scalar_lea.vmem [#allocation6], %s703
          %v723 = vld [vmem:[%s722] sm:$0xff]
          %v724 = vld [vmem:[%s722 + $0x8] sm:$0xff]
          %726 = vset.pattern.permute.xlu0 0
          %727 = vperm.xlu0 %726, %v723
          %v728 = vpop.permute.xlu0 %727
          %731 = vset.pattern.permute.xlu0 0
          %732 = vperm.xlu0 %731, %v724
          %v733 = vpop.permute.xlu0 %732
          %v735 = vadd.f32 %v720, %v728
          %v736 = vadd.f32 %v721, %v733
          %s737 = scalar_lea.vmem %s338, 16 [#allocation14]
          %738 = vst.msk [vmem:[%s737] sm:$0xff] %vm699, %v735
          %739 = vst.msk [vmem:[%s737 + $0x8] sm:$0xff] %vm699, %v736
        $region64: #{tpu_custom_call.1} parent=43 // pred_fallthru
          _
        %s740 = sand.u32 %s195, 1
        %s741 = scalar_lea.sflag [#allocation10], %s740
        %s742 = sand.u32 %s195, 1
        %s743 = smul.addr %s742, 32
        %s744 = scalar_lea.vmem [#allocation14], %s743
        // Predicated region
        $region65: #{tpu_custom_call.1} parent=43 // pred_check
          %p745 = pneg %p205
        $region66: #{tpu_custom_call.1} parent=43 // pred_check_branch
          %747 = sbr.rel (%p745) target = $region68
        $region67: #{tpu_custom_call.1} parent=43 // pred_region
          %s748 = smul.u32 %s28, %s29
          %s749 = smul.u32 2, %s748
          %s751 = ssub.s32 512, 512
          %752 = vsyncadd %s741, %s751
          %s753 = smul.addr %s749, 2
          %s754 = smul.addr %s753, 128
          %s755 = scalar_lea.hbm %s7, %s754
          %s756 = sshll.u32 %s744, 4
          %s757 = int_to_ptr.vmem [resolvable:$true] %s756
          %762 = dma.vmem_to_hbm [thread:$0]  %s757, 512, %s755, %s741, 128, 128, 8
        $region68: #{tpu_custom_call.1} parent=43 // pred_fallthru
          _
      $region44: #{tpu_custom_call.1} parent=5 // pred_fallthru
        _
      %p763 = scmp.le.s32.totalorder 2, %s19
      // Predicated region
      $region69: #{tpu_custom_call.1} parent=5 // pred_check
        %p764 = pneg %p763
      $region70: #{tpu_custom_call.1} parent=5 // pred_check_branch
        %766 = sbr.rel (%p764) target = $region72
      $region71: #{tpu_custom_call.1} parent=5 // pred_region
        %s767 = ssub.s32 %s19, 2
        // Predicated region
        $region73: #{tpu_custom_call.1} parent=71 // pred_check
          %p768 = pneg %p211
        $region74: #{tpu_custom_call.1} parent=71 // pred_check_branch
          %770 = sbr.rel (%p768) target = $region76
        $region75: #{tpu_custom_call.1} parent=71 // pred_region
          %s771 = sand.u32 %s196, 1
          %s772 = scalar_lea.sflag [#allocation10], %s771
          %s773 = sand.u32 %s196, 1
          %s774 = smul.addr %s773, 32
          %s775 = scalar_lea.vmem [#allocation14], %s774
          %776 = dma.done %s772, 512
        $region76: #{tpu_custom_call.1} parent=71 // pred_fallthru
          _
      $region72: #{tpu_custom_call.1} parent=5 // pred_fallthru
        _
    $region6: #{tpu_custom_call.1} parent=1 // loop_footer
      %s23 = sadd.s32 1, %s19
    $region7: #{tpu_custom_call.1} parent=1 // loop_footer_branch
      %18 = sbr.rel target = $region3
    $region8: #{tpu_custom_call.1} parent=1 // loop_exit
      _
    %777 = vsyncpa [#allocation10], 1
    %s778 = scalar_lea.sflag [#allocation10], 1
    %779 = vsyncpa %s778, 1
    %780 = vsyncpa [#allocation11], 1
    %s781 = scalar_lea.sflag [#allocation11], 1
    %782 = vsyncpa %s781, 1
    %783 = vsyncpa [#allocation13], 1

</llo_original>
